<compile_context>
chip_gen: v7x
topology: tpu7x:2x2x1
jax: 0.10.0
libtpu: 0.0.40
codegen_flags: <defaults>
</compile_context>

<pallas_src>
import jax
import jax.numpy as jnp
from jax.experimental import pallas as pl
from jax.experimental.pallas import tpu as pltpu


_NSLOT = 4                               # outstanding DMAs (chunk pipeline depth)
_MIN_CHUNKS = 4                          # keep >= 4 chunks even for medium inputs
_TARGET_CHUNK_BYTES = 4 * 1024 * 1024    # ~4 MiB per DMA chunk
_WIDTHS = (1024, 512, 256, 128)          # lane-dense last-dim candidates


# ---------------------------------------------------------------------------
# Kernels: direct HBM -> HBM identity copy via async DMA (no VMEM staging).
# ---------------------------------------------------------------------------
def _make_chunked_copy_kernel(rows, rows_per_chunk, nslot):
    """Copy a (rows, width) HBM slab to another HBM slab in row chunks."""
    full_chunks = rows // rows_per_chunk
    tail_rows = rows - full_chunks * rows_per_chunk
    prime = min(nslot, full_chunks)

    def kernel(x_hbm, o_hbm, sem):
        def chunk_copy(c, slot):
            start = c * rows_per_chunk
            return pltpu.make_async_copy(
                x_hbm.at[pl.ds(start, rows_per_chunk), :],
                o_hbm.at[pl.ds(start, rows_per_chunk), :],
                sem.at[slot],
            )

        # Prime the pipeline with up to `nslot` outstanding DMAs (static unroll).
        for c in range(prime):
            chunk_copy(c, c).start()

        # Steady state: wait on chunk c, immediately issue chunk c + prime.
        @pl.loop(0, full_chunks)
        def _(c):
            chunk_copy(c, c % nslot).wait()
            nxt = c + prime

            @pl.when(nxt < full_chunks)
            def _():
                chunk_copy(nxt, nxt % nslot).start()

        # Ragged row tail (static size) if rows % rows_per_chunk != 0.
        if tail_rows > 0:
            t0 = full_chunks * rows_per_chunk
            tail = pltpu.make_async_copy(
                x_hbm.at[pl.ds(t0, tail_rows), :],
                o_hbm.at[pl.ds(t0, tail_rows), :],
                sem.at[0],
            )
            tail.start()
            tail.wait()

    return kernel


def _whole_copy_kernel(x_hbm, o_hbm, sem):
    # numel % 128 != 0 path: single whole-array HBM->HBM DMA — no pad, no
    # slice, minimum possible traffic (2 * numel bytes).
    cp = pltpu.make_async_copy(x_hbm, o_hbm, sem.at[0])
    cp.start()
    cp.wait()


def _pallas_copy_flat(flat):
    """Materialize a fresh copy of a 1-D element buffer via Pallas DMA."""
    n = flat.shape[0]
    if n == 0:
        return flat
    itemsize = jnp.dtype(flat.dtype).itemsize
    bytes_accessed = 2 * n * itemsize

    width = next((w for w in _WIDTHS if n % w == 0), None)

    if width is None:
        return pl.pallas_call(
            _whole_copy_kernel,
            out_shape=jax.ShapeDtypeStruct((n,), flat.dtype),
            in_specs=[pl.BlockSpec(memory_space=pl.ANY)],
            out_specs=pl.BlockSpec(memory_space=pl.ANY),
            scratch_shapes=[pltpu.SemaphoreType.DMA((1,))],
            cost_estimate=pl.CostEstimate(
                flops=0, transcendentals=0, bytes_accessed=bytes_accessed),
        )(flat)

    rows = n // width
    slab = flat.reshape(rows, width)          # metadata-only
    sub = max(8, 32 // itemsize)              # sublane pack: 8 f32 / 16 bf16 / 32 i8

    # Rows per DMA chunk: ~_TARGET_CHUNK_BYTES, but cap so there are at least
    # _MIN_CHUNKS chunks (engage several DMA engines for medium inputs), align
    # down to the dtype's sublane tile, and never exceed the slab.
    rpc = _TARGET_CHUNK_BYTES // (width * itemsize)
    rpc = min(rpc, pl.cdiv(rows, _MIN_CHUNKS))
    rpc = max((rpc // sub) * sub, sub)
    rpc = min(rpc, rows)

    out = pl.pallas_call(
        _make_chunked_copy_kernel(rows, rpc, _NSLOT),
        out_shape=jax.ShapeDtypeStruct((rows, width), flat.dtype),
        in_specs=[pl.BlockSpec(memory_space=pl.ANY)],
        out_specs=pl.BlockSpec(memory_space=pl.ANY),
        scratch_shapes=[pltpu.SemaphoreType.DMA((_NSLOT,))],
        cost_estimate=pl.CostEstimate(
            flops=0, transcendentals=0, bytes_accessed=bytes_accessed),
    )(slab)
    return out.reshape(-1)                    # metadata-only


# ---------------------------------------------------------------------------
# View module equivalent
# ---------------------------------------------------------------------------
def _resolve_size(size, numel):
    """torch .view semantics: at most one -1, inferred from numel."""
    size = tuple(int(s) for s in size)
    if size.count(-1) > 1:
        raise ValueError("only one dimension can be inferred")
    if -1 in size:
        known = 1
        for s in size:
            if s != -1:
                known *= s
        if known == 0 or numel % known != 0:
            raise ValueError(f"shape {size} is invalid for input of size {numel}")
        size = tuple(numel // known if s == -1 else s for s in size)
    else:
        prod = 1
        for s in size:
            prod *= s
        if prod != numel:
            raise ValueError(f"shape {size} is invalid for input of size {numel}")
    return size


class View:
    """JAX/Pallas equivalent of encoding.nn.customize.View.

    Default path is a metadata-only reshape (exactly what torch .view does).
    Pass force_copy=True to materialize the result via the Pallas DMA copy.
    """

    def __init__(self, *args, force_copy=False):
        if len(args) == 1 and isinstance(args[0], (tuple, list)):
            self.size = tuple(args[0])
        else:
            self.size = tuple(args)
        self.force_copy = force_copy

    def _view_one(self, x):
        target = _resolve_size(self.size, x.size)
        if not self.force_copy:
            # Hot path: reshape is metadata-only — zero HBM traffic.
            return x.reshape(target)
        flat = x.reshape(-1)                 # row-major flatten (metadata)
        copied = _pallas_copy_flat(flat)     # Pallas HBM->HBM DMA copy
        return copied.reshape(target)        # reinterpret shape (metadata)

    def __call__(self, inp):
        if isinstance(inp, (tuple, list)):   # view_each semantics
            return type(inp)(self._view_one(t) for t in inp)
        elif isinstance(inp, jnp.ndarray) or hasattr(inp, "shape"):
            return self._view_one(inp)
        else:
            raise RuntimeError("unknown input type")


# ---------------------------------------------------------------------------
if __name__ == "__main__":
    key = jax.random.PRNGKey(0)
    N, C, H, W = 2, 4, 16, 16
    x = jax.random.normal(key, (N, C, H, W), dtype=jnp.float32)

    # Default (metadata-only) path — matches torch .view semantics.
    y = View(N, -1)(x)
    y = jax.block_until_ready(y)
    ref = x.reshape(N, C * H * W)
    assert y.shape == (N, C * H * W), y.shape
    assert y.dtype == x.dtype
    assert bool(jnp.all(y == ref))

    # Pallas DMA-copy path (force_copy) — exercises the kernel on TPU.
    y_copy = View(N, -1, force_copy=True)(x)
    y_copy = jax.block_until_ready(y_copy)
    assert y_copy.shape == (N, C * H * W)
    assert y_copy.dtype == x.dtype
    assert bool(jnp.all(y_copy == ref))

    # Ragged-numel case (numel % 128 != 0) through the whole-array DMA path.
    z = jax.random.normal(key, (3, 5, 7), dtype=jnp.float32)  # 105 elements
    z_out = View(-1,)(View(105, force_copy=True)(z))
    z_out = jax.block_until_ready(z_out)
    assert bool(jnp.all(z_out == z.reshape(-1)))

    # Tuple input (view_each path), through the Pallas copy as well.
    k1, k2 = jax.random.split(key)
    xs = (jax.random.normal(k1, (N, C, H, W), jnp.float32),
          jax.random.normal(k2, (N, C, H, W), jnp.float32))
    ys = View(N, C, H * W, force_copy=True)(xs)
    ys = jax.block_until_ready(ys)
    assert all(yi.shape == (N, C, H * W) for yi in ys)
    assert all(bool(jnp.all(yi == xi.reshape(N, C, H * W)))
               for yi, xi in zip(ys, xs))

    print("KERNEL_OK")
</pallas_src>

<mosaic_0001>
module attributes {stable_mosaic.version = 11 : i64} {
  func.func @kernel(%arg0: memref<2x1024xf32, #tpu.memory_space<any>>, %arg1: memref<2x1024xf32, #tpu.memory_space<any>>, %arg2: memref<4x!tpu.dma_semaphore, #tpu.memory_space<semaphore_mem>>) attributes {dimension_semantics = [], scalar_prefetch = 0 : i64, scratch_operands = 1 : i64, tpu.core_type = #tpu.core_type<tc>} {
    %c0_i32 = arith.constant 0 : i32
    %c0_i32_0 = arith.constant 0 : i32
    %c0_i32_1 = arith.constant 0 : i32
    %0 = tpu.memref_slice %arg0[%c0_i32_0, %c0_i32_1] : memref<2x1024xf32, #tpu.memory_space<any>> -> memref<2x1024xf32, #tpu.memory_space<any>>
    %c0_i32_2 = arith.constant 0 : i32
    %c0_i32_3 = arith.constant 0 : i32
    %1 = tpu.memref_slice %arg1[%c0_i32_2, %c0_i32_3] : memref<2x1024xf32, #tpu.memory_space<any>> -> memref<2x1024xf32, #tpu.memory_space<any>>
    %2 = tpu.memref_slice %arg2[%c0_i32] : memref<4x!tpu.dma_semaphore, #tpu.memory_space<semaphore_mem>> -> memref<1x!tpu.dma_semaphore, #tpu.memory_space<semaphore_mem>>
    %3 = tpu.memref_squeeze %2 : memref<1x!tpu.dma_semaphore, #tpu.memory_space<semaphore_mem>> -> memref<!tpu.dma_semaphore, #tpu.memory_space<semaphore_mem>>
    tpu.enqueue_dma source(%0 : memref<2x1024xf32, #tpu.memory_space<any>>) target(%1 : memref<2x1024xf32, #tpu.memory_space<any>>) target_semaphore(%3 : memref<!tpu.dma_semaphore, #tpu.memory_space<semaphore_mem>>)
    %c0_i32_4 = arith.constant 0 : i32
    %c1_i32 = arith.constant 1 : i32
    %4 = arith.muli %c0_i32_4, %c1_i32 : i32
    %c0_i32_5 = arith.constant 0 : i32
    %5 = arith.addi %c0_i32_5, %4 : i32
    %c4_i32 = arith.constant 4 : i32
    %c0_i32_6 = arith.constant 0 : i32
    %6 = arith.cmpi eq, %c4_i32, %c0_i32_6 : i32
    %c1_i32_7 = arith.constant 1 : i32
    %7 = arith.select %6, %c1_i32_7, %c4_i32 : i32
    %8 = arith.remsi %5, %7 : i32
    %c0_i32_8 = arith.constant 0 : i32
    %9 = arith.cmpi ne, %8, %c0_i32_8 : i32
    %c0_i32_9 = arith.constant 0 : i32
    %10 = arith.cmpi slt, %8, %c0_i32_9 : i32
    %c0_i32_10 = arith.constant 0 : i32
    %11 = arith.cmpi slt, %7, %c0_i32_10 : i32
    %12 = arith.xori %10, %11 : i1
    %13 = arith.andi %12, %9 : i1
    %14 = arith.addi %8, %7 : i32
    %15 = arith.select %13, %14, %8 : i32
    %c2_i32 = arith.constant 2 : i32
    %16 = arith.muli %5, %c2_i32 : i32
    %c0_i32_11 = arith.constant 0 : i32
    %17 = tpu.memref_slice %arg0[%16, %c0_i32_11] : memref<2x1024xf32, #tpu.memory_space<any>> -> memref<2x1024xf32, #tpu.memory_space<any>>
    %c0_i32_12 = arith.constant 0 : i32
    %18 = tpu.memref_slice %arg1[%16, %c0_i32_12] : memref<2x1024xf32, #tpu.memory_space<any>> -> memref<2x1024xf32, #tpu.memory_space<any>>
    %19 = tpu.memref_slice %arg2[%15] : memref<4x!tpu.dma_semaphore, #tpu.memory_space<semaphore_mem>> -> memref<1x!tpu.dma_semaphore, #tpu.memory_space<semaphore_mem>>
    %20 = tpu.memref_squeeze %19 : memref<1x!tpu.dma_semaphore, #tpu.memory_space<semaphore_mem>> -> memref<!tpu.dma_semaphore, #tpu.memory_space<semaphore_mem>>
    tpu.wait_dma2 semaphore(%20 : memref<!tpu.dma_semaphore, #tpu.memory_space<semaphore_mem>>) src(%17 : memref<2x1024xf32, #tpu.memory_space<any>>) dst(%18 : memref<2x1024xf32, #tpu.memory_space<any>>)
    %c1_i32_13 = arith.constant 1 : i32
    %21 = arith.addi %5, %c1_i32_13 : i32
    %c1_i32_14 = arith.constant 1 : i32
    %22 = arith.cmpi slt, %21, %c1_i32_14 : i32
    %23 = arith.extui %22 : i1 to i32
    %c0_i32_15 = arith.constant 0 : i32
    %24 = arith.cmpi ne, %23, %c0_i32_15 : i32
    scf.if %24 {
      %c4_i32_17 = arith.constant 4 : i32
      %c0_i32_18 = arith.constant 0 : i32
      %25 = arith.cmpi eq, %c4_i32_17, %c0_i32_18 : i32
      %c1_i32_19 = arith.constant 1 : i32
      %26 = arith.select %25, %c1_i32_19, %c4_i32_17 : i32
      %27 = arith.remsi %21, %26 : i32
      %c0_i32_20 = arith.constant 0 : i32
      %28 = arith.cmpi ne, %27, %c0_i32_20 : i32
      %c0_i32_21 = arith.constant 0 : i32
      %29 = arith.cmpi slt, %27, %c0_i32_21 : i32
      %c0_i32_22 = arith.constant 0 : i32
      %30 = arith.cmpi slt, %26, %c0_i32_22 : i32
      %31 = arith.xori %29, %30 : i1
      %32 = arith.andi %31, %28 : i1
      %33 = arith.addi %27, %26 : i32
      %34 = arith.select %32, %33, %27 : i32
      %c2_i32_23 = arith.constant 2 : i32
      %35 = arith.muli %21, %c2_i32_23 : i32
      %c0_i32_24 = arith.constant 0 : i32
      %36 = tpu.memref_slice %arg0[%35, %c0_i32_24] : memref<2x1024xf32, #tpu.memory_space<any>> -> memref<2x1024xf32, #tpu.memory_space<any>>
      %c0_i32_25 = arith.constant 0 : i32
      %37 = tpu.memref_slice %arg1[%35, %c0_i32_25] : memref<2x1024xf32, #tpu.memory_space<any>> -> memref<2x1024xf32, #tpu.memory_space<any>>
      %38 = tpu.memref_slice %arg2[%34] : memref<4x!tpu.dma_semaphore, #tpu.memory_space<semaphore_mem>> -> memref<1x!tpu.dma_semaphore, #tpu.memory_space<semaphore_mem>>
      %39 = tpu.memref_squeeze %38 : memref<1x!tpu.dma_semaphore, #tpu.memory_space<semaphore_mem>> -> memref<!tpu.dma_semaphore, #tpu.memory_space<semaphore_mem>>
      tpu.enqueue_dma source(%36 : memref<2x1024xf32, #tpu.memory_space<any>>) target(%37 : memref<2x1024xf32, #tpu.memory_space<any>>) target_semaphore(%39 : memref<!tpu.dma_semaphore, #tpu.memory_space<semaphore_mem>>)
    } else {
    }
    %c1_i32_16 = arith.constant 1 : i32
    return
  }
}

</mosaic_0001>

<llo_original>
// kernel: tpu_custom_call.1
$region0: #{tpu_custom_call.1}
  #allocation0 [shape = 'u32[]', space=smem, size = 0x4, offset = 0x4, fixed_abs, tag = 'smem constant byte address 0x4 - core index']
  #allocation1 [shape = 'u32[144,128]{1,0:T(1,128)}', space=vmem, size = 0x12000, scoped, tag = 'internal scratch']
  #allocation2 [shape = 's32[4]{0}', space=sflag, size = 0x10, scoped, tag = 'scratch operand']
  #allocation3 [shape = 's32[]', space=sflag, size = 0x4, offset = 0, fixed_abs, tag = 'sflag constant byte address 0x0 - dummy sync flag']
  #allocation4 [shape = 'u32[0]{0}', space=smem, size = 0, offset = 0, fixed_abs, tag = 'smem constant byte address 0x0 - null']
  %s0 = inlined_call_operand.hbm [shape: f32[2,1024], index: 0, kind: input, shape index: {}]
  %s1 = inlined_call_operand.hbm [shape: f32[2,1024], index: 1, kind: output, shape index: {}]
  %s2 = sld [smem:[#allocation0]]
  $region2: #{tpu_custom_call.1} parent=0
    _
  %s4 = ssub.s32 1, %s2
  %s5 = scalar_select 0, %s4, %s2
  %s7 = sshll.u32 1, 14
  %s8 = sxor.u32 4294967295, %s7
  %s11 = sshll.u32 3, 24
  %s12 = sxor.u32 4294967295, %s11
  %s13 = sand.u32 0, %s12
  %s15 = sor.u32 %s13, 0
  %18 = dma.general %s0, 256, %s1, [#allocation2], [#allocation3], [#allocation4], %s15, 0
  %s19 = smul.u32 2, 1
  %s20 = smul.u32 %s19, 8
  %s21 = sshll.u32 %s20, 4
  %22 = dma.done [#allocation2], %s21
  %23 = vsyncmov [#allocation2]
  %s24 = vpop.sfrf %23
  %p25 = scmp.eq.s32.totalorder %s24, 0
  %p26 = pneg %p25
  %28 = shalt.err (%p26)
  %s29 = scalar_lea.sflag [#allocation2], 1
  %30 = vsyncmov %s29
  %s31 = vpop.sfrf %30
  %p32 = scmp.eq.s32.totalorder %s31, 0
  %p33 = pneg %p32
  %35 = shalt.err (%p33)
  %s36 = scalar_lea.sflag [#allocation2], 2
  %37 = vsyncmov %s36
  %s38 = vpop.sfrf %37
  %p39 = scmp.eq.s32.totalorder %s38, 0
  %p40 = pneg %p39
  %42 = shalt.err (%p40)
  %s43 = scalar_lea.sflag [#allocation2], 3
  %44 = vsyncmov %s43
  %s45 = vpop.sfrf %44
  %p46 = scmp.eq.s32.totalorder %s45, 0
  %p47 = pneg %p46
  %49 = shalt.err (%p47)

</llo_original>
